<compile_context>
chip_gen: v7x
topology: tpu7x:2x2x1
jax: 0.10.0
libtpu: 0.0.40
codegen_flags: <defaults>
</compile_context>

<pallas_src>
import jax
import jax.numpy as jnp
from jax.experimental import pallas as pl
from jax.experimental.pallas import tpu as pltpu


# ----------------------------------------------------------------------------
# Kernels
# ----------------------------------------------------------------------------
def _nt_kernel(x_ref, w_ref, b_ref, o_ref):
    # x:(tS, K)  w:(tO, K)  b:(tO, 1)  ->  o:(tO, tS)   (already permuted)
    acc = jax.lax.dot_general(
        w_ref[...], x_ref[...],
        dimension_numbers=(((1,), (1,)), ((), ())),      # contract shared IN
        preferred_element_type=jnp.float32,
        precision=jax.lax.Precision.HIGHEST,
    )
    o_ref[...] = (acc + b_ref[...].astype(jnp.float32)).astype(o_ref.dtype)


def _nt_kernel_ktiled(x_ref, w_ref, b_ref, o_ref, acc_ref):
    # Same contraction, but IN is split over grid axis 3 and accumulated in an
    # f32 VMEM scratch (init at k==0, bias-add + store at k==last).
    k = pl.program_id(3)

    @pl.when(k == 0)
    def _():
        acc_ref[...] = jnp.zeros_like(acc_ref)

    acc_ref[...] += jax.lax.dot_general(
        w_ref[...], x_ref[...],
        dimension_numbers=(((1,), (1,)), ((), ())),
        preferred_element_type=jnp.float32,
        precision=jax.lax.Precision.HIGHEST,
    )

    @pl.when(k == pl.num_programs(3) - 1)
    def _():
        o_ref[...] = (acc_ref[...] + b_ref[...].astype(jnp.float32)).astype(o_ref.dtype)


def _sn_kernel(x_ref, w_ref, b_ref, o_ref):
    # Small-S fallback: o:(tS, tO) with OUT on the lane axis (dense stores when
    # OUT >= 128); the (0,2,1) permute is then done by XLA on the tiny result.
    acc = jax.lax.dot_general(
        x_ref[...], w_ref[...],
        dimension_numbers=(((1,), (1,)), ((), ())),
        preferred_element_type=jnp.float32,
        precision=jax.lax.Precision.HIGHEST,
    )
    o_ref[...] = (acc + b_ref[...].astype(jnp.float32)).astype(o_ref.dtype)


# ----------------------------------------------------------------------------
# Helpers
# ----------------------------------------------------------------------------
def _vmem_capacity_bytes():
    try:
        cap = getattr(pltpu.get_tpu_info(), "vmem_capacity_bytes", None)
        if cap:
            return int(cap)
    except Exception:
        pass
    return 64 * 1024 * 1024  # conservative fallback (v7x per-core figure)


# ----------------------------------------------------------------------------
# Primary path: fused matmul with the permuted (B, OUT, S) output produced
# directly by the kernel.  Intended regime: S >= ~128 (lane-dense stores).
# ----------------------------------------------------------------------------
def _fused_linear_permute(x, w_sum, b_sum):
    B, S, IN = x.shape
    OUT = w_sum.shape[0]
    dtype = x.dtype
    itemsize = jnp.dtype(dtype).itemsize

    cap = _vmem_capacity_bytes()
    ceiling = int(cap * 0.75)            # ~48 MiB on v7x, ~96 MiB on v5e/v6e
    big_vmem = cap >= (100 << 20)        # v5e/v6e (128 MiB) vs v7x (64 MiB)

    # --- K (contracted IN) blocking -----------------------------------------
    # Full-extent K block unless IN is large; a *partial* K block would
    # contract uninitialized data, so K is only tiled when it divides evenly.
    if IN > 1024 and IN % 512 == 0:
        t_k = 512
    else:
        t_k = IN
    n_k = max(1, IN // t_k)

    # --- S (output lane) / OUT (output sublane) tiles ------------------------
    # Either a multiple of (8, 128) or the full extent (exempt from the rule).
    t_s_pref = 1024 if big_vmem else 512
    t_o_pref = 512 if big_vmem else 256
    t_s = S if S <= t_s_pref else t_s_pref
    t_o = OUT if OUT <= t_o_pref else t_o_pref

    def _need(ts, to):
        # double-buffered x/w/bias/out tiles (+ f32 accumulator when K-tiled);
        # the bias tile occupies a full 128-lane row in VMEM.
        tile = (ts * t_k + to * t_k + to * 128 + to * ts) * itemsize
        return 2 * tile + (to * ts * 4 if n_k > 1 else 0)

    # Shrink tiles (keeping alignment) if the footprint would overrun VMEM.
    while _need(t_s, t_o) > ceiling and (t_s > 128 or t_o > 8):
        if t_s >= 2 * t_o and t_s > 128:
            t_s = max(128, (t_s // 2) // 128 * 128)
        elif t_o > 8:
            t_o = max(8, (t_o // 2) // 8 * 8)
        else:
            t_s = max(128, (t_s // 2) // 128 * 128)

    n_s = pl.cdiv(S, t_s)
    n_o = pl.cdiv(OUT, t_o)
    b_col = b_sum.reshape(OUT, 1)

    # Grid order: keep the larger operand resident in VMEM across the inner
    # axis (its block index is constant there, so Pallas skips the re-DMA).
    # Usually the per-batch x slab >> W, so si is outer and oi is inner.
    x_resident = (S * IN) >= (OUT * IN)

    if n_k == 1:
        kernel = _nt_kernel
        scratch = []
        if x_resident:
            grid = (B, n_s, n_o)
            x_map = lambda b, si, oi: (b, si, 0)
            w_map = lambda b, si, oi: (oi, 0)
            bias_map = lambda b, si, oi: (oi, 0)
            o_map = lambda b, si, oi: (b, oi, si)
        else:
            grid = (B, n_o, n_s)
            x_map = lambda b, oi, si: (b, si, 0)
            w_map = lambda b, oi, si: (oi, 0)
            bias_map = lambda b, oi, si: (oi, 0)
            o_map = lambda b, oi, si: (b, oi, si)
        dims = ("parallel", "parallel", "parallel")
    else:
        kernel = _nt_kernel_ktiled
        scratch = [pltpu.VMEM((t_o, t_s), jnp.float32)]
        if x_resident:
            grid = (B, n_s, n_o, n_k)
            x_map = lambda b, si, oi, ki: (b, si, ki)
            w_map = lambda b, si, oi, ki: (oi, ki)
            bias_map = lambda b, si, oi, ki: (oi, 0)
            o_map = lambda b, si, oi, ki: (b, oi, si)
        else:
            grid = (B, n_o, n_s, n_k)
            x_map = lambda b, oi, si, ki: (b, si, ki)
            w_map = lambda b, oi, si, ki: (oi, ki)
            bias_map = lambda b, oi, si, ki: (oi, 0)
            o_map = lambda b, oi, si, ki: (b, oi, si)
        dims = ("parallel", "parallel", "parallel", "arbitrary")

    vmem_limit = int(min(ceiling, max(32 << 20, 2 * _need(t_s, t_o))))

    # TODO(synk): if pl.lower_as_mlir ever shows an explicit vxpose of the x
    # tile for this NT contraction AND the kernel is MXU-bound, pre-transpose
    # x to (B, IN, S) in the wrapper; in the mem-bound small-IN regime the
    # extra HBM pass would cost more than it saves.
    return pl.pallas_call(
        kernel,
        out_shape=jax.ShapeDtypeStruct((B, OUT, S), dtype),
        grid_spec=pltpu.PrefetchScalarGridSpec(
            num_scalar_prefetch=0,
            grid=grid,
            in_specs=[
                pl.BlockSpec((None, t_s, t_k), x_map),
                pl.BlockSpec((t_o, t_k), w_map),
                pl.BlockSpec((t_o, 1), bias_map),
            ],
            out_specs=pl.BlockSpec((None, t_o, t_s), o_map),
            scratch_shapes=scratch,
        ),
        compiler_params=pltpu.CompilerParams(
            dimension_semantics=dims,
            vmem_limit_bytes=vmem_limit,
        ),
    )(x, w_sum, b_col)


# ----------------------------------------------------------------------------
# Small-S fallback: lane-dense (B, S, OUT) output, permute done by XLA.
# ----------------------------------------------------------------------------
def _fused_linear_small_s(x, w_sum, b_sum):
    B, S, IN = x.shape
    OUT = w_sum.shape[0]
    dtype = x.dtype
    itemsize = jnp.dtype(dtype).itemsize

    cap = _vmem_capacity_bytes()
    ceiling = int(cap * 0.75)

    t_o = OUT if OUT <= 512 else 512          # multiple of 128 or full extent
    n_o = pl.cdiv(OUT, t_o)
    # TODO(synk): add K tiling here too if this path is ever used with huge IN;
    # small-S callers have tiny per-tile footprints, so full-K is fine today.

    need = 2 * (S * IN + t_o * IN + 8 * t_o + S * t_o) * itemsize
    vmem_limit = int(min(ceiling, max(32 << 20, 2 * need)))

    b_row = b_sum.reshape(1, OUT)
    y = pl.pallas_call(
        _sn_kernel,
        out_shape=jax.ShapeDtypeStruct((B, S, OUT), dtype),
        grid_spec=pltpu.PrefetchScalarGridSpec(
            num_scalar_prefetch=0,
            grid=(B, n_o),
            in_specs=[
                pl.BlockSpec((None, S, IN), lambda b, oi: (b, 0, 0)),
                pl.BlockSpec((t_o, IN), lambda b, oi: (oi, 0)),
                pl.BlockSpec((1, t_o), lambda b, oi: (0, oi)),
            ],
            out_specs=pl.BlockSpec((None, S, t_o), lambda b, oi: (b, 0, oi)),
        ),
        compiler_params=pltpu.CompilerParams(
            dimension_semantics=("parallel", "parallel"),
            vmem_limit_bytes=vmem_limit,
        ),
    )(x, w_sum, b_row)
    return jnp.transpose(y, (0, 2, 1))


# ----------------------------------------------------------------------------
# Public forward: mirrors Model.forward exactly.
# ----------------------------------------------------------------------------
def model_forward(x, w1, b1, w2, b2):
    """x: (B, S, IN); w*: (OUT, IN) PyTorch layout; b*: (OUT,). Returns (B, OUT, S)."""
    B, S, IN = x.shape
    OUT = w1.shape[0]

    # One-time algebraic fusion (summed in f32; exact for f32 params — for
    # bf16 params this rounds once vs. PyTorch's two f32-accumulated matmuls,
    # a dtype-ulp level difference).
    w_sum = (w1.astype(jnp.float32) + w2.astype(jnp.float32)).astype(x.dtype)
    b_sum = (b1.astype(jnp.float32) + b2.astype(jnp.float32)).astype(x.dtype)

    # Intended regime for the fused-permute kernel is S >= ~128 (lane-dense
    # output stores).  For small S (the module's own case is S=2) the
    # transposed layout would waste most store bandwidth on lane masking, so
    # use the lane-dense (S, OUT) kernel and let XLA do the cheap permute.
    if S >= 32 or S >= OUT:
        return _fused_linear_permute(x, w_sum, b_sum)
    return _fused_linear_small_s(x, w_sum, b_sum)


# ----------------------------------------------------------------------------
# Demo / self-check
# ----------------------------------------------------------------------------
if __name__ == "__main__":
    key = jax.random.PRNGKey(0)
    kx, k1w, k1b, k2w, k2b, kx2 = jax.random.split(key, 6)

    def make_params(key_w, key_b, out_f, in_f):
        bound = 1.0 / (in_f ** 0.5)
        w = jax.random.uniform(key_w, (out_f, in_f), minval=-bound, maxval=bound,
                               dtype=jnp.float32)
        b = jax.random.uniform(key_b, (out_f,), minval=-bound, maxval=bound,
                               dtype=jnp.float32)
        return w, b

    def reference(x, w1, b1, w2, b2):
        y = (jnp.einsum("bsi,oi->bso", x, w1, precision="highest") + b1
             + jnp.einsum("bsi,oi->bso", x, w2, precision="highest") + b2)
        return jnp.transpose(y, (0, 2, 1))

    # 1) Exact module shape: Linear(2, 4) applied to x1 = randn(1, 2, 2) -> (1, 4, 2)
    B, S, IN, OUT = 1, 2, 2, 4
    x_small = jax.random.normal(kx, (B, S, IN), dtype=jnp.float32)
    w1, b1 = make_params(k1w, k1b, OUT, IN)
    w2, b2 = make_params(k2w, k2b, OUT, IN)
    out_small = model_forward(x_small, w1, b1, w2, b2)
    jax.block_until_ready(out_small)
    assert out_small.shape == (B, OUT, S)
    assert jnp.allclose(out_small, reference(x_small, w1, b1, w2, b2), atol=1e-4), \
        "small-shape mismatch vs reference"

    # 2) Larger (still small) shape exercising the fused transposed-output kernel.
    B2, S2, IN2, OUT2 = 2, 256, 32, 64
    x_big = jax.random.normal(kx2, (B2, S2, IN2), dtype=jnp.float32)
    w1b, b1b = make_params(k1w, k1b, OUT2, IN2)
    w2b, b2b = make_params(k2w, k2b, OUT2, IN2)
    out_big = model_forward(x_big, w1b, b1b, w2b, b2b)
    jax.block_until_ready(out_big)
    assert out_big.shape == (B2, OUT2, S2)
    assert jnp.allclose(out_big, reference(x_big, w1b, b1b, w2b, b2b), atol=1e-4), \
        "large-shape mismatch vs reference"

    print("KERNEL_OK")
</pallas_src>

<mosaic_0001>
module attributes {stable_mosaic.version = 11 : i64} {
  func.func @_sn_kernel(%arg0: i32, %arg1: i32, %arg2: memref<1x2x2xf32, #tpu.memory_space<vmem>>, %arg3: memref<4x2xf32, #tpu.memory_space<vmem>>, %arg4: memref<1x4xf32, #tpu.memory_space<vmem>>, %arg5: memref<1x2x4xf32, #tpu.memory_space<vmem>>) attributes {dimension_semantics = [#tpu.dimension_semantics<parallel>, #tpu.dimension_semantics<parallel>], iteration_bounds = array<i64: 1, 1>, scalar_prefetch = 0 : i64, scratch_operands = 0 : i64, tpu.core_type = #tpu.core_type<tc>, window_params = [{transform_indices = @transform_0, window_bounds = array<i64: 1, 2, 2>}, {transform_indices = @transform_1, window_bounds = array<i64: 4, 2>}, {transform_indices = @transform_2, window_bounds = array<i64: 1, 4>}, {transform_indices = @transform_3, window_bounds = array<i64: 1, 2, 4>}]} {
    %c0 = arith.constant 0 : index
    %c0_0 = arith.constant 0 : index
    %c0_1 = arith.constant 0 : index
    %0 = vector.load %arg2[%c0, %c0_0, %c0_1] : memref<1x2x2xf32, #tpu.memory_space<vmem>>, vector<1x2x2xf32>
    %1 = vector.shape_cast %0 : vector<1x2x2xf32> to vector<2x2xf32>
    %c0_2 = arith.constant 0 : index
    %c0_3 = arith.constant 0 : index
    %2 = vector.load %arg3[%c0_2, %c0_3] : memref<4x2xf32, #tpu.memory_space<vmem>>, vector<4x2xf32>
    %cst = arith.constant dense<0.000000e+00> : vector<2x4xf32>
    %3 = tpu.matmul %1, %2, %cst {dimension_numbers = #tpu.dot_dimension_numbers<[1], [1], [0], [0], [0, 0, 1, 0], [], []>, precision = #tpu.contract_precision<fp32>} : vector<2x2xf32>, vector<4x2xf32>, vector<2x4xf32> -> vector<2x4xf32>
    %c0_4 = arith.constant 0 : index
    %c0_5 = arith.constant 0 : index
    %4 = vector.load %arg4[%c0_4, %c0_5] : memref<1x4xf32, #tpu.memory_space<vmem>>, vector<1x4xf32>
    %5 = vector.broadcast %4 : vector<1x4xf32> to vector<2x4xf32>
    %6 = arith.addf %3, %5 : vector<2x4xf32>
    %c0_6 = arith.constant 0 : index
    %c0_7 = arith.constant 0 : index
    %c0_8 = arith.constant 0 : index
    %7 = vector.load %arg5[%c0_6, %c0_7, %c0_8] : memref<1x2x4xf32, #tpu.memory_space<vmem>>, vector<1x2x4xf32>
    %8 = vector.shape_cast %7 : vector<1x2x4xf32> to vector<2x4xf32>
    %9 = vector.shape_cast %6 : vector<2x4xf32> to vector<1x2x4xf32>
    tpu.vector_store %arg5[%c0_6, %c0_7, %c0_8], %9 {strides = array<i32>} : memref<1x2x4xf32, #tpu.memory_space<vmem>>, vector<1x2x4xf32>,
    return
  }
  func.func @transform_0(%arg0: i32, %arg1: i32) -> (i32, i32, i32) {
    %c0_i32 = arith.constant 0 : i32
    %c0_i32_0 = arith.constant 0 : i32
    %c0_i32_1 = arith.constant 0 : i32
    return %arg0, %c0_i32, %c0_i32_0 : i32, i32, i32
  }
  func.func @transform_1(%arg0: i32, %arg1: i32) -> (i32, i32) {
    %c0_i32 = arith.constant 0 : i32
    %c0_i32_0 = arith.constant 0 : i32
    return %arg1, %c0_i32 : i32, i32
  }
  func.func @transform_2(%arg0: i32, %arg1: i32) -> (i32, i32) {
    %c0_i32 = arith.constant 0 : i32
    %c0_i32_0 = arith.constant 0 : i32
    return %c0_i32, %arg1 : i32, i32
  }
  func.func @transform_3(%arg0: i32, %arg1: i32) -> (i32, i32, i32) {
    %c0_i32 = arith.constant 0 : i32
    %c0_i32_0 = arith.constant 0 : i32
    return %arg0, %c0_i32, %arg1 : i32, i32, i32
  }
}

</mosaic_0001>

<llo_original>
// kernel: tpu_custom_call.1
$region0: #{tpu_custom_call.1}
  #allocation0 [shape = 'u32[]', space=smem, size = 0x4, offset = 0x4, fixed_abs, tag = 'smem constant byte address 0x4 - core index']
  #allocation1 [shape = 'u32[144,128]{1,0:T(1,128)}', space=vmem, size = 0x12000, scoped, tag = 'internal scratch']
  %s0 = inlined_call_operand.vmem [shape: f32[1,2,2], index: 0, kind: input, shape index: {}]
  %s1 = inlined_call_operand.vmem [shape: f32[4,2], index: 1, kind: input, shape index: {}]
  %s2 = inlined_call_operand.vmem [shape: f32[1,4], index: 2, kind: input, shape index: {}]
  %s3 = inlined_call_operand.hbm [shape: f32[1,2,4], index: 3, kind: output, shape index: {}]
  %s4 = sld [smem:[#allocation0]]
  $region22: #{tpu_custom_call.1} parent=0
    _
  %s6 = ssub.s32 1, %s4
  %s7 = scalar_select 0, %s6, %s4
  $region1: #{tpu_custom_call.1} parent=0
    #allocation2 [shape = 'u8[1024]{0}', space=vmem, size = 0x400, scoped, tag = 'output window, operand 0, single buffered']
    #allocation3 [shape = 's32[1]{0}', space=sflag, size = 0x4, scoped, tag = 'scoped memory for tpu_custom_call.1']
    %8 = vsyncpa [#allocation3], 0
    // Predicated region
    $region2: #{tpu_custom_call.1} parent=1 // pred_check
      _
    $region3: #{tpu_custom_call.1} parent=1 // pred_check_branch
      %10 = sbr.rel (0) target = $region5
    $region4: #{tpu_custom_call.1} parent=1 // pred_region
      _
    $region5: #{tpu_custom_call.1} parent=1 // pred_fallthru
      _
    // Predicated region
    $region6: #{tpu_custom_call.1} parent=1 // pred_check
      _
    $region7: #{tpu_custom_call.1} parent=1 // pred_check_branch
      %12 = sbr.rel (0) target = $region9
    $region8: #{tpu_custom_call.1} parent=1 // pred_region
      _
    $region9: #{tpu_custom_call.1} parent=1 // pred_fallthru
      _
    // Predicated region
    $region10: #{tpu_custom_call.1} parent=1 // pred_check
      _
    $region11: #{tpu_custom_call.1} parent=1 // pred_check_branch
      %14 = sbr.rel (0) target = $region13
    $region12: #{tpu_custom_call.1} parent=1 // pred_region
      _
    $region13: #{tpu_custom_call.1} parent=1 // pred_fallthru
      _
    %v15 = vld [vmem:[%s0] sm:$0x3]
    %v16 = vld [vmem:[%s1] sm:$0xf]
    %v17 = vld [vmem:[%s2] sm:$0x1]
    %v19 = vlaneseq
    %v20 = vshrl.u32 %v19, 7
    %v21 = vsub.s32 0, %v20
    %v22 = vrot.slane %v17, %v21
    %vm24 = vcmask 15360
    %v26 = vsel %vm24, %v15, 0
    %v29 = vsel %vm24, %v16, 0
    %31 = vmatprep.subr.mxu0 0.0
    %v32 = vand.u32 %v29, 4294901760
    %33 = vmatpush1.xpose.msra.mxu0 %v32
    %34 = vmatprep.subr.mxu0 0.0
    %35 = vmatpush1.xpose.msra.mxu0 0.0
    %36 = vmatprep.subr.mxu0 0.0
    %37 = vmatpush1.xpose.msra.mxu0 0.0
    %38 = vmatprep.subr.mxu0 0.0
    %39 = vmatpush1.xpose.msra.mxu0 0.0
    %40 = vmatprep.subr.mxu0 0.0
    %41 = vmatpush1.xpose.msra.mxu0 0.0
    %42 = vmatprep.subr.mxu0 0.0
    %43 = vmatpush1.xpose.msra.mxu0 0.0
    %44 = vmatprep.subr.mxu0 0.0
    %45 = vmatpush1.xpose.msra.mxu0 0.0
    %46 = vmatprep.subr.mxu0 0.0
    %47 = vmatpush1.xpose.msra.mxu0 0.0
    %48 = vmatprep.subr.mxu0 0.0
    %49 = vmatpush1.xpose.msra.mxu0 0.0
    %50 = vmatprep.subr.mxu0 0.0
    %51 = vmatpush1.xpose.msra.mxu0 0.0
    %52 = vmatprep.subr.mxu0 0.0
    %53 = vmatpush1.xpose.msra.mxu0 0.0
    %54 = vmatprep.subr.mxu0 0.0
    %55 = vmatpush1.xpose.msra.mxu0 0.0
    %56 = vmatprep.subr.mxu0 0.0
    %57 = vmatpush1.xpose.msra.mxu0 0.0
    %58 = vmatprep.subr.mxu0 0.0
    %59 = vmatpush1.xpose.msra.mxu0 0.0
    %60 = vmatprep.subr.mxu0 0.0
    %61 = vmatpush1.xpose.msra.mxu0 0.0
    %62 = vmatprep.subr.mxu0 0.0
    %63 = vmatpush1.xpose.msra.mxu0 0.0
    %64 = vmatprep.subr.mxu0 0.0
    %65 = vmatpush1.xpose.msra.mxu0 0.0
    %66 = vmatprep.subr.mxu0 0.0
    %67 = vmatpush1.xpose.msra.mxu0 0.0
    %68 = vmatprep.subr.mxu0 0.0
    %69 = vmatpush1.xpose.msra.mxu0 0.0
    %70 = vmatprep.subr.mxu0 0.0
    %71 = vmatpush1.xpose.msra.mxu0 0.0
    %72 = vmatprep.subr.mxu0 0.0
    %73 = vmatpush1.xpose.msra.mxu0 0.0
    %74 = vmatprep.subr.mxu0 0.0
    %75 = vmatpush1.xpose.msra.mxu0 0.0
    %76 = vmatprep.subr.mxu0 0.0
    %77 = vmatpush1.xpose.msra.mxu0 0.0
    %78 = vmatprep.subr.mxu0 0.0
    %79 = vmatpush1.xpose.msra.mxu0 0.0
    %80 = vmatprep.subr.mxu0 0.0
    %81 = vmatpush1.xpose.msra.mxu0 0.0
    %82 = vmatprep.subr.mxu0 0.0
    %83 = vmatpush1.xpose.msra.mxu0 0.0
    %84 = vmatprep.subr.mxu0 0.0
    %85 = vmatpush1.xpose.msra.mxu0 0.0
    %86 = vmatprep.subr.mxu0 0.0
    %87 = vmatpush1.xpose.msra.mxu0 0.0
    %88 = vmatprep.subr.mxu0 0.0
    %89 = vmatpush1.xpose.msra.mxu0 0.0
    %90 = vmatprep.subr.mxu0 0.0
    %91 = vmatpush1.xpose.msra.mxu0 0.0
    %92 = vmatprep.subr.mxu0 0.0
    %93 = vmatpush1.xpose.msra.mxu0 0.0
    %94 = vmatprep.subr.mxu0 0.0
    %95 = vmatpush1.xpose.msra.mxu0 0.0
    %96 = vmatprep.mubr.f32.mxu0 0.0
    %v97 = vand.u32 %v26, 4294901760
    %v98 = vsub.f32 %v26, %v97
    %v99 = vand.u32 %v98, 4294901760
    %v100 = vsub.f32 %v98, %v99
    %v101 = vand.u32 %v100, 4294901760
    %102 = vmatmul.mubr.f32.gmra.mrb[0].mxu0 %v101
    %v103 = vpop.f32.mrb[0].mxu0
    %v104 = vadd.f32 %v22, %v103
    %v105 = vpop.f32.mrb[0].mxu0
    %106 = vdwg.mxu0
    %107 = vmatprep.subr.mxu0 0.0
    %v108 = vand.u32 %v29, 4294901760
    %v109 = vsub.f32 %v29, %v108
    %v110 = vand.u32 %v109, 4294901760
    %v111 = vsub.f32 %v109, %v110
    %v112 = vand.u32 %v111, 4294901760
    %113 = vmatpush1.xpose.msra.mxu0 %v112
    %114 = vmatprep.subr.mxu0 0.0
    %115 = vmatpush1.xpose.msra.mxu0 0.0
    %116 = vmatprep.subr.mxu0 0.0
    %117 = vmatpush1.xpose.msra.mxu0 0.0
    %118 = vmatprep.subr.mxu0 0.0
    %119 = vmatpush1.xpose.msra.mxu0 0.0
    %120 = vmatprep.subr.mxu0 0.0
    %121 = vmatpush1.xpose.msra.mxu0 0.0
    %122 = vmatprep.subr.mxu0 0.0
    %123 = vmatpush1.xpose.msra.mxu0 0.0
    %124 = vmatprep.subr.mxu0 0.0
    %125 = vmatpush1.xpose.msra.mxu0 0.0
    %126 = vmatprep.subr.mxu0 0.0
    %127 = vmatpush1.xpose.msra.mxu0 0.0
    %128 = vmatprep.subr.mxu0 0.0
    %129 = vmatpush1.xpose.msra.mxu0 0.0
    %130 = vmatprep.subr.mxu0 0.0
    %131 = vmatpush1.xpose.msra.mxu0 0.0
    %132 = vmatprep.subr.mxu0 0.0
    %133 = vmatpush1.xpose.msra.mxu0 0.0
    %134 = vmatprep.subr.mxu0 0.0
    %135 = vmatpush1.xpose.msra.mxu0 0.0
    %136 = vmatprep.subr.mxu0 0.0
    %137 = vmatpush1.xpose.msra.mxu0 0.0
    %138 = vmatprep.subr.mxu0 0.0
    %139 = vmatpush1.xpose.msra.mxu0 0.0
    %140 = vmatprep.subr.mxu0 0.0
    %141 = vmatpush1.xpose.msra.mxu0 0.0
    %142 = vmatprep.subr.mxu0 0.0
    %143 = vmatpush1.xpose.msra.mxu0 0.0
    %144 = vmatprep.subr.mxu0 0.0
    %145 = vmatpush1.xpose.msra.mxu0 0.0
    %146 = vmatprep.subr.mxu0 0.0
    %147 = vmatpush1.xpose.msra.mxu0 0.0
    %148 = vmatprep.subr.mxu0 0.0
    %149 = vmatpush1.xpose.msra.mxu0 0.0
    %150 = vmatprep.subr.mxu0 0.0
    %151 = vmatpush1.xpose.msra.mxu0 0.0
    %152 = vmatprep.subr.mxu0 0.0
    %153 = vmatpush1.xpose.msra.mxu0 0.0
    %154 = vmatprep.subr.mxu0 0.0
    %155 = vmatpush1.xpose.msra.mxu0 0.0
    %156 = vmatprep.subr.mxu0 0.0
    %157 = vmatpush1.xpose.msra.mxu0 0.0
    %158 = vmatprep.subr.mxu0 0.0
    %159 = vmatpush1.xpose.msra.mxu0 0.0
    %160 = vmatprep.subr.mxu0 0.0
    %161 = vmatpush1.xpose.msra.mxu0 0.0
    %162 = vmatprep.subr.mxu0 0.0
    %163 = vmatpush1.xpose.msra.mxu0 0.0
    %164 = vmatprep.subr.mxu0 0.0
    %165 = vmatpush1.xpose.msra.mxu0 0.0
    %166 = vmatprep.subr.mxu0 0.0
    %167 = vmatpush1.xpose.msra.mxu0 0.0
    %168 = vmatprep.subr.mxu0 0.0
    %169 = vmatpush1.xpose.msra.mxu0 0.0
    %170 = vmatprep.subr.mxu0 0.0
    %171 = vmatpush1.xpose.msra.mxu0 0.0
    %172 = vmatprep.subr.mxu0 0.0
    %173 = vmatpush1.xpose.msra.mxu0 0.0
    %174 = vmatprep.subr.mxu0 0.0
    %175 = vmatpush1.xpose.msra.mxu0 0.0
    %176 = vmatprep.mubr.f32.mxu0 0.0
    %v177 = vand.u32 %v26, 4294901760
    %178 = vmatmul.mubr.f32.gmra.mrb[0].mxu0 %v177
    %v179 = vpop.f32.mrb[0].mxu0
    %v180 = vadd.f32 %v104, %v179
    %v181 = vpop.f32.mrb[0].mxu0
    %182 = vdwg.mxu0
    %183 = vmatprep.subr.mxu0 0.0
    %v184 = vand.u32 %v29, 4294901760
    %v185 = vsub.f32 %v29, %v184
    %186 = vmatpush1.xpose.msra.mxu0 %v185
    %187 = vmatprep.subr.mxu0 0.0
    %188 = vmatpush1.xpose.msra.mxu0 0.0
    %189 = vmatprep.subr.mxu0 0.0
    %190 = vmatpush1.xpose.msra.mxu0 0.0
    %191 = vmatprep.subr.mxu0 0.0
    %192 = vmatpush1.xpose.msra.mxu0 0.0
    %193 = vmatprep.subr.mxu0 0.0
    %194 = vmatpush1.xpose.msra.mxu0 0.0
    %195 = vmatprep.subr.mxu0 0.0
    %196 = vmatpush1.xpose.msra.mxu0 0.0
    %197 = vmatprep.subr.mxu0 0.0
    %198 = vmatpush1.xpose.msra.mxu0 0.0
    %199 = vmatprep.subr.mxu0 0.0
    %200 = vmatpush1.xpose.msra.mxu0 0.0
    %201 = vmatprep.subr.mxu0 0.0
    %202 = vmatpush1.xpose.msra.mxu0 0.0
    %203 = vmatprep.subr.mxu0 0.0
    %204 = vmatpush1.xpose.msra.mxu0 0.0
    %205 = vmatprep.subr.mxu0 0.0
    %206 = vmatpush1.xpose.msra.mxu0 0.0
    %207 = vmatprep.subr.mxu0 0.0
    %208 = vmatpush1.xpose.msra.mxu0 0.0
    %209 = vmatprep.subr.mxu0 0.0
    %210 = vmatpush1.xpose.msra.mxu0 0.0
    %211 = vmatprep.subr.mxu0 0.0
    %212 = vmatpush1.xpose.msra.mxu0 0.0
    %213 = vmatprep.subr.mxu0 0.0
    %214 = vmatpush1.xpose.msra.mxu0 0.0
    %215 = vmatprep.subr.mxu0 0.0
    %216 = vmatpush1.xpose.msra.mxu0 0.0
    %217 = vmatprep.subr.mxu0 0.0
    %218 = vmatpush1.xpose.msra.mxu0 0.0
    %219 = vmatprep.subr.mxu0 0.0
    %220 = vmatpush1.xpose.msra.mxu0 0.0
    %221 = vmatprep.subr.mxu0 0.0
    %222 = vmatpush1.xpose.msra.mxu0 0.0
    %223 = vmatprep.subr.mxu0 0.0
    %224 = vmatpush1.xpose.msra.mxu0 0.0
    %225 = vmatprep.subr.mxu0 0.0
    %226 = vmatpush1.xpose.msra.mxu0 0.0
    %227 = vmatprep.subr.mxu0 0.0
    %228 = vmatpush1.xpose.msra.mxu0 0.0
    %229 = vmatprep.subr.mxu0 0.0
    %230 = vmatpush1.xpose.msra.mxu0 0.0
    %231 = vmatprep.subr.mxu0 0.0
    %232 = vmatpush1.xpose.msra.mxu0 0.0
    %233 = vmatprep.subr.mxu0 0.0
    %234 = vmatpush1.xpose.msra.mxu0 0.0
    %235 = vmatprep.subr.mxu0 0.0
    %236 = vmatpush1.xpose.msra.mxu0 0.0
    %237 = vmatprep.subr.mxu0 0.0
    %238 = vmatpush1.xpose.msra.mxu0 0.0
    %239 = vmatprep.subr.mxu0 0.0
    %240 = vmatpush1.xpose.msra.mxu0 0.0
    %241 = vmatprep.subr.mxu0 0.0
    %242 = vmatpush1.xpose.msra.mxu0 0.0
    %243 = vmatprep.subr.mxu0 0.0
    %244 = vmatpush1.xpose.msra.mxu0 0.0
    %245 = vmatprep.subr.mxu0 0.0
    %246 = vmatpush1.xpose.msra.mxu0 0.0
    %247 = vmatprep.subr.mxu0 0.0
    %248 = vmatpush1.xpose.msra.mxu0 0.0
    %249 = vmatprep.mubr.f32.mxu0 0.0
    %v250 = vand.u32 %v26, 4294901760
    %v251 = vsub.f32 %v26, %v250
    %252 = vmatmul.mubr.f32.gmra.mrb[0].mxu0 %v251
    %v253 = vpop.f32.mrb[0].mxu0
    %v254 = vadd.f32 %v180, %v253
    %v255 = vpop.f32.mrb[0].mxu0
    %256 = vdwg.mxu0
    %257 = vmatprep.subr.mxu0 0.0
    %v258 = vand.u32 %v29, 4294901760
    %259 = vmatpush1.xpose.msra.mxu0 %v258
    %260 = vmatprep.subr.mxu0 0.0
    %261 = vmatpush1.xpose.msra.mxu0 0.0
    %262 = vmatprep.subr.mxu0 0.0
    %263 = vmatpush1.xpose.msra.mxu0 0.0
    %264 = vmatprep.subr.mxu0 0.0
    %265 = vmatpush1.xpose.msra.mxu0 0.0
    %266 = vmatprep.subr.mxu0 0.0
    %267 = vmatpush1.xpose.msra.mxu0 0.0
    %268 = vmatprep.subr.mxu0 0.0
    %269 = vmatpush1.xpose.msra.mxu0 0.0
    %270 = vmatprep.subr.mxu0 0.0
    %271 = vmatpush1.xpose.msra.mxu0 0.0
    %272 = vmatprep.subr.mxu0 0.0
    %273 = vmatpush1.xpose.msra.mxu0 0.0
    %274 = vmatprep.subr.mxu0 0.0
    %275 = vmatpush1.xpose.msra.mxu0 0.0
    %276 = vmatprep.subr.mxu0 0.0
    %277 = vmatpush1.xpose.msra.mxu0 0.0
    %278 = vmatprep.subr.mxu0 0.0
    %279 = vmatpush1.xpose.msra.mxu0 0.0
    %280 = vmatprep.subr.mxu0 0.0
    %281 = vmatpush1.xpose.msra.mxu0 0.0
    %282 = vmatprep.subr.mxu0 0.0
    %283 = vmatpush1.xpose.msra.mxu0 0.0
    %284 = vmatprep.subr.mxu0 0.0
    %285 = vmatpush1.xpose.msra.mxu0 0.0
    %286 = vmatprep.subr.mxu0 0.0
    %287 = vmatpush1.xpose.msra.mxu0 0.0
    %288 = vmatprep.subr.mxu0 0.0
    %289 = vmatpush1.xpose.msra.mxu0 0.0
    %290 = vmatprep.subr.mxu0 0.0
    %291 = vmatpush1.xpose.msra.mxu0 0.0
    %292 = vmatprep.subr.mxu0 0.0
    %293 = vmatpush1.xpose.msra.mxu0 0.0
    %294 = vmatprep.subr.mxu0 0.0
    %295 = vmatpush1.xpose.msra.mxu0 0.0
    %296 = vmatprep.subr.mxu0 0.0
    %297 = vmatpush1.xpose.msra.mxu0 0.0
    %298 = vmatprep.subr.mxu0 0.0
    %299 = vmatpush1.xpose.msra.mxu0 0.0
    %300 = vmatprep.subr.mxu0 0.0
    %301 = vmatpush1.xpose.msra.mxu0 0.0
    %302 = vmatprep.subr.mxu0 0.0
    %303 = vmatpush1.xpose.msra.mxu0 0.0
    %304 = vmatprep.subr.mxu0 0.0
    %305 = vmatpush1.xpose.msra.mxu0 0.0
    %306 = vmatprep.subr.mxu0 0.0
    %307 = vmatpush1.xpose.msra.mxu0 0.0
    %308 = vmatprep.subr.mxu0 0.0
    %309 = vmatpush1.xpose.msra.mxu0 0.0
    %310 = vmatprep.subr.mxu0 0.0
    %311 = vmatpush1.xpose.msra.mxu0 0.0
    %312 = vmatprep.subr.mxu0 0.0
    %313 = vmatpush1.xpose.msra.mxu0 0.0
    %314 = vmatprep.subr.mxu0 0.0
    %315 = vmatpush1.xpose.msra.mxu0 0.0
    %316 = vmatprep.subr.mxu0 0.0
    %317 = vmatpush1.xpose.msra.mxu0 0.0
    %318 = vmatprep.subr.mxu0 0.0
    %319 = vmatpush1.xpose.msra.mxu0 0.0
    %320 = vmatprep.subr.mxu0 0.0
    %321 = vmatpush1.xpose.msra.mxu0 0.0
    %322 = vmatprep.mubr.f32.mxu0 0.0
    %v323 = vand.u32 %v26, 4294901760
    %v324 = vsub.f32 %v26, %v323
    %v325 = vand.u32 %v324, 4294901760
    %326 = vmatmul.mubr.f32.gmra.mrb[0].mxu0 %v325
    %v327 = vpop.f32.mrb[0].mxu0
    %v328 = vadd.f32 %v254, %v327
    %v329 = vpop.f32.mrb[0].mxu0
    %330 = vdwg.mxu0
    %331 = vmatprep.subr.mxu0 0.0
    %v332 = vand.u32 %v29, 4294901760
    %v333 = vsub.f32 %v29, %v332
    %v334 = vand.u32 %v333, 4294901760
    %335 = vmatpush1.xpose.msra.mxu0 %v334
    %336 = vmatprep.subr.mxu0 0.0
    %337 = vmatpush1.xpose.msra.mxu0 0.0
    %338 = vmatprep.subr.mxu0 0.0
    %339 = vmatpush1.xpose.msra.mxu0 0.0
    %340 = vmatprep.subr.mxu0 0.0
    %341 = vmatpush1.xpose.msra.mxu0 0.0
    %342 = vmatprep.subr.mxu0 0.0
    %343 = vmatpush1.xpose.msra.mxu0 0.0
    %344 = vmatprep.subr.mxu0 0.0
    %345 = vmatpush1.xpose.msra.mxu0 0.0
    %346 = vmatprep.subr.mxu0 0.0
    %347 = vmatpush1.xpose.msra.mxu0 0.0
    %348 = vmatprep.subr.mxu0 0.0
    %349 = vmatpush1.xpose.msra.mxu0 0.0
    %350 = vmatprep.subr.mxu0 0.0
    %351 = vmatpush1.xpose.msra.mxu0 0.0
    %352 = vmatprep.subr.mxu0 0.0
    %353 = vmatpush1.xpose.msra.mxu0 0.0
    %354 = vmatprep.subr.mxu0 0.0
    %355 = vmatpush1.xpose.msra.mxu0 0.0
    %356 = vmatprep.subr.mxu0 0.0
    %357 = vmatpush1.xpose.msra.mxu0 0.0
    %358 = vmatprep.subr.mxu0 0.0
    %359 = vmatpush1.xpose.msra.mxu0 0.0
    %360 = vmatprep.subr.mxu0 0.0
    %361 = vmatpush1.xpose.msra.mxu0 0.0
    %362 = vmatprep.subr.mxu0 0.0
    %363 = vmatpush1.xpose.msra.mxu0 0.0
    %364 = vmatprep.subr.mxu0 0.0
    %365 = vmatpush1.xpose.msra.mxu0 0.0
    %366 = vmatprep.subr.mxu0 0.0
    %367 = vmatpush1.xpose.msra.mxu0 0.0
    %368 = vmatprep.subr.mxu0 0.0
    %369 = vmatpush1.xpose.msra.mxu0 0.0
    %370 = vmatprep.subr.mxu0 0.0
    %371 = vmatpush1.xpose.msra.mxu0 0.0
    %372 = vmatprep.subr.mxu0 0.0
    %373 = vmatpush1.xpose.msra.mxu0 0.0
    %374 = vmatprep.subr.mxu0 0.0
    %375 = vmatpush1.xpose.msra.mxu0 0.0
    %376 = vmatprep.subr.mxu0 0.0
    %377 = vmatpush1.xpose.msra.mxu0 0.0
    %378 = vmatprep.subr.mxu0 0.0
    %379 = vmatpush1.xpose.msra.mxu0 0.0
    %380 = vmatprep.subr.mxu0 0.0
    %381 = vmatpush1.xpose.msra.mxu0 0.0
    %382 = vmatprep.subr.mxu0 0.0
    %383 = vmatpush1.xpose.msra.mxu0 0.0
    %384 = vmatprep.subr.mxu0 0.0
    %385 = vmatpush1.xpose.msra.mxu0 0.0
    %386 = vmatprep.subr.mxu0 0.0
    %387 = vmatpush1.xpose.msra.mxu0 0.0
    %388 = vmatprep.subr.mxu0 0.0
    %389 = vmatpush1.xpose.msra.mxu0 0.0
    %390 = vmatprep.subr.mxu0 0.0
    %391 = vmatpush1.xpose.msra.mxu0 0.0
    %392 = vmatprep.subr.mxu0 0.0
    %393 = vmatpush1.xpose.msra.mxu0 0.0
    %394 = vmatprep.subr.mxu0 0.0
    %395 = vmatpush1.xpose.msra.mxu0 0.0
    %396 = vmatprep.subr.mxu0 0.0
    %397 = vmatpush1.xpose.msra.mxu0 0.0
    %398 = vmatprep.mubr.f32.mxu0 0.0
    %v399 = vand.u32 %v26, 4294901760
    %400 = vmatmul.mubr.f32.gmra.mrb[0].mxu0 %v399
    %v401 = vpop.f32.mrb[0].mxu0
    %v402 = vadd.f32 %v328, %v401
    %v403 = vpop.f32.mrb[0].mxu0
    %404 = vdwg.mxu0
    %405 = vmatprep.subr.mxu0 0.0
    %v406 = vand.u32 %v29, 4294901760
    %407 = vmatpush1.xpose.msra.mxu0 %v406
    %408 = vmatprep.subr.mxu0 0.0
    %409 = vmatpush1.xpose.msra.mxu0 0.0
    %410 = vmatprep.subr.mxu0 0.0
    %411 = vmatpush1.xpose.msra.mxu0 0.0
    %412 = vmatprep.subr.mxu0 0.0
    %413 = vmatpush1.xpose.msra.mxu0 0.0
    %414 = vmatprep.subr.mxu0 0.0
    %415 = vmatpush1.xpose.msra.mxu0 0.0
    %416 = vmatprep.subr.mxu0 0.0
    %417 = vmatpush1.xpose.msra.mxu0 0.0
    %418 = vmatprep.subr.mxu0 0.0
    %419 = vmatpush1.xpose.msra.mxu0 0.0
    %420 = vmatprep.subr.mxu0 0.0
    %421 = vmatpush1.xpose.msra.mxu0 0.0
    %422 = vmatprep.subr.mxu0 0.0
    %423 = vmatpush1.xpose.msra.mxu0 0.0
    %424 = vmatprep.subr.mxu0 0.0
    %425 = vmatpush1.xpose.msra.mxu0 0.0
    %426 = vmatprep.subr.mxu0 0.0
    %427 = vmatpush1.xpose.msra.mxu0 0.0
    %428 = vmatprep.subr.mxu0 0.0
    %429 = vmatpush1.xpose.msra.mxu0 0.0
    %430 = vmatprep.subr.mxu0 0.0
    %431 = vmatpush1.xpose.msra.mxu0 0.0
    %432 = vmatprep.subr.mxu0 0.0
    %433 = vmatpush1.xpose.msra.mxu0 0.0
    %434 = vmatprep.subr.mxu0 0.0
    %435 = vmatpush1.xpose.msra.mxu0 0.0
    %436 = vmatprep.subr.mxu0 0.0
    %437 = vmatpush1.xpose.msra.mxu0 0.0
    %438 = vmatprep.subr.mxu0 0.0
    %439 = vmatpush1.xpose.msra.mxu0 0.0
    %440 = vmatprep.subr.mxu0 0.0
    %441 = vmatpush1.xpose.msra.mxu0 0.0
    %442 = vmatprep.subr.mxu0 0.0
    %443 = vmatpush1.xpose.msra.mxu0 0.0
    %444 = vmatprep.subr.mxu0 0.0
    %445 = vmatpush1.xpose.msra.mxu0 0.0
    %446 = vmatprep.subr.mxu0 0.0
    %447 = vmatpush1.xpose.msra.mxu0 0.0
    %448 = vmatprep.subr.mxu0 0.0
    %449 = vmatpush1.xpose.msra.mxu0 0.0
    %450 = vmatprep.subr.mxu0 0.0
    %451 = vmatpush1.xpose.msra.mxu0 0.0
    %452 = vmatprep.subr.mxu0 0.0
    %453 = vmatpush1.xpose.msra.mxu0 0.0
    %454 = vmatprep.subr.mxu0 0.0
    %455 = vmatpush1.xpose.msra.mxu0 0.0
    %456 = vmatprep.subr.mxu0 0.0
    %457 = vmatpush1.xpose.msra.mxu0 0.0
    %458 = vmatprep.subr.mxu0 0.0
    %459 = vmatpush1.xpose.msra.mxu0 0.0
    %460 = vmatprep.subr.mxu0 0.0
    %461 = vmatpush1.xpose.msra.mxu0 0.0
    %462 = vmatprep.subr.mxu0 0.0
    %463 = vmatpush1.xpose.msra.mxu0 0.0
    %464 = vmatprep.subr.mxu0 0.0
    %465 = vmatpush1.xpose.msra.mxu0 0.0
    %466 = vmatprep.subr.mxu0 0.0
    %467 = vmatpush1.xpose.msra.mxu0 0.0
    %468 = vmatprep.subr.mxu0 0.0
    %469 = vmatpush1.xpose.msra.mxu0 0.0
    %470 = vmatprep.mubr.f32.mxu0 0.0
    %v471 = vand.u32 %v26, 4294901760
    %472 = vmatmul.mubr.f32.gmra.mrb[0].mxu0 %v471
    %v473 = vpop.f32.mrb[0].mxu0
    %v474 = vadd.f32 %v402, %v473
    %v475 = vpop.f32.mrb[0].mxu0
    %476 = vdwg.mxu0
    %vm477 = vcmask 25600
    %478 = vst.msk [vmem:[#allocation2] sm:$0x3] %vm477, %v474
    // Predicated region
    $region14: #{tpu_custom_call.1} parent=1 // pred_check
      _
    $region15: #{tpu_custom_call.1} parent=1 // pred_check_branch
      %480 = sbr.rel (0) target = $region17
    $region16: #{tpu_custom_call.1} parent=1 // pred_region
      %s482 = ssub.s32 32, 32
      %483 = vsyncadd [#allocation3], %s482
      %s485 = sshll.u32 [#allocation2], 4
      %s486 = int_to_ptr.vmem [resolvable:$true] %s485
      %488 = dma.vmem_to_hbm [thread:$0]  %s486, 32, %s3, [#allocation3]
    $region17: #{tpu_custom_call.1} parent=1 // pred_fallthru
      _
    // Predicated region
    $region18: #{tpu_custom_call.1} parent=1 // pred_check
      _
    $region19: #{tpu_custom_call.1} parent=1 // pred_check_branch
      %490 = sbr.rel (0) target = $region21
    $region20: #{tpu_custom_call.1} parent=1 // pred_region
      %491 = dma.done [#allocation3], 32
    $region21: #{tpu_custom_call.1} parent=1 // pred_fallthru
      _
    %492 = vsyncpa [#allocation3], 1

</llo_original>
